<compile_context>
chip_gen: v6e
topology: v6e:2x2x1
jax: 0.10.0
libtpu: 0.0.40
codegen_flags: <defaults>
</compile_context>

<pallas_src>
import functools

import jax
import jax.numpy as jnp
from jax.experimental import pallas as pl
from jax.experimental.pallas import tpu as pltpu


def cvae_kernel(
    # activations / noise (batch tile)
    x_ref, xm_ref, eps_ref,
    # embedding params
    emb_w1_ref, emb_b1_ref, emb_w2_ref, emb_b2_ref,
    # encoder params (weight rows split: x part, embedding part)
    enc_wx_ref, enc_we_ref, enc_b_ref,
    # fused mu||sigma head
    ms_w_ref, ms_b_ref,
    # decoder params (first weight rows split: z part, embedding part)
    dec_wz_ref, dec_we_ref, dec_b1_ref, dec_w2_ref, dec_b2_ref,
    # packed output [TB, input_dim + 2*latent] = [out | mu | sigma]
    out_ref,
    *, input_dim, latent_dim,
):
    f32 = jnp.float32
    x = x_ref[...]          # [TB, input_dim]
    xm = xm_ref[...]        # [TB, input_dim]
    eps = eps_ref[...]      # [TB, latent_dim]

    # ---- embedding(x_mean): Linear+ReLU, Linear+ReLU ----
    h = jnp.dot(xm, emb_w1_ref[...], preferred_element_type=f32) + emb_b1_ref[...]
    h = jnp.maximum(h, 0.0)
    emb = jnp.dot(h, emb_w2_ref[...], preferred_element_type=f32) + emb_b2_ref[...]
    emb = jnp.maximum(emb, 0.0)                                   # [TB, latent]

    # ---- encoder(cat([x, emb])): Linear+ReLU  (concat == split matmul) ----
    h2 = jnp.dot(x, enc_wx_ref[...], preferred_element_type=f32)
    h2 = h2 + jnp.dot(emb, enc_we_ref[...], preferred_element_type=f32)
    h2 = jnp.maximum(h2 + enc_b_ref[...], 0.0)                    # [TB, hid]

    # ---- fused mu / sigma head: one matmul, slice the result in-register ----
    ms = jnp.dot(h2, ms_w_ref[...], preferred_element_type=f32) + ms_b_ref[...]
    mu = ms[:, :latent_dim]
    sigma = jnp.exp(ms[:, latent_dim:])                           # EUP op

    # ---- reparameterization: z = mu + sigma * N(0,1) ----
    z = mu + sigma * eps                                          # [TB, latent]

    # ---- decoder(cat([z, emb])): Linear+ReLU, Linear ----
    h3 = jnp.dot(z, dec_wz_ref[...], preferred_element_type=f32)
    h3 = h3 + jnp.dot(emb, dec_we_ref[...], preferred_element_type=f32)
    h3 = jnp.maximum(h3 + dec_b1_ref[...], 0.0)                   # [TB, hid]
    out = jnp.dot(h3, dec_w2_ref[...], preferred_element_type=f32) + dec_b2_ref[...]

    # ---- single lane-dense packed store: [out | mu | sigma] ----
    packed = jnp.concatenate([out, mu, sigma], axis=-1)
    out_ref[...] = packed.astype(out_ref.dtype)


def init_params(key, input_dim, encoder_hidden_dims):
    """Deterministic synthetic parameters (torch nn.Linear, pre-transposed to (in, out))."""
    latent_dim = encoder_hidden_dims[-1]
    hid = encoder_hidden_dims[0]   # single hidden width in this config

    def linear(k, din, dout):
        kw, kb = jax.random.split(k)
        w = jax.random.normal(kw, (din, dout), jnp.float32) * 0.1
        b = jax.random.normal(kb, (1, dout), jnp.float32) * 0.1
        return w, b

    keys = jax.random.split(key, 8)
    p = {}
    # embedding: Linear(input_dim -> hid), Linear(hid -> latent)
    p["emb_w1"], p["emb_b1"] = linear(keys[0], input_dim, hid)
    p["emb_w2"], p["emb_b2"] = linear(keys[1], hid, latent_dim)
    # encoder: Linear(input_dim + latent -> hid); split rows to emulate cat([x, emb])
    enc_w, p["enc_b"] = linear(keys[2], input_dim + latent_dim, hid)
    p["enc_wx"], p["enc_we"] = enc_w[:input_dim], enc_w[input_dim:]
    # mu / sigma heads: Linear(hid -> latent) each, fused along the output dim
    mu_w, mu_b = linear(keys[3], hid, latent_dim)
    sig_w, sig_b = linear(keys[4], hid, latent_dim)
    p["ms_w"] = jnp.concatenate([mu_w, sig_w], axis=1)    # [hid, 2*latent]
    p["ms_b"] = jnp.concatenate([mu_b, sig_b], axis=1)    # [1, 2*latent]
    # decoder: Linear(2*latent -> hid), Linear(hid -> input_dim); split first weight rows
    dec_w1, p["dec_b1"] = linear(keys[5], 2 * latent_dim, hid)
    p["dec_wz"], p["dec_we"] = dec_w1[:latent_dim], dec_w1[latent_dim:]
    p["dec_w2"], p["dec_b2"] = linear(keys[6], hid, input_dim)
    return p


_ARG_ORDER = [
    "emb_w1", "emb_b1", "emb_w2", "emb_b2",
    "enc_wx", "enc_we", "enc_b",
    "ms_w", "ms_b",
    "dec_wz", "dec_we", "dec_b1", "dec_w2", "dec_b2",
]


def cvae_forward(x, x_mean, eps, params, *, batch_tile=512):
    """x, x_mean: [B, ...spatial...] ; eps: [B, latent_dim] ~ N(0,1)."""
    input_shape = x.shape
    B = x.shape[0]
    x_in = x.reshape(B, -1).astype(jnp.float32)      # flatten(start_dim=1)
    xm = x_mean.reshape(B, -1).astype(jnp.float32)
    eps = eps.astype(jnp.float32)
    input_dim = x_in.shape[1]
    latent_dim = eps.shape[1]
    packed_dim = input_dim + 2 * latent_dim

    # Batch tile: multiple of 8 sublanes, capped at batch_tile; pad batch up to it.
    b8 = max(8, pl.cdiv(B, 8) * 8)
    tb = min(batch_tile, b8)
    b_pad = pl.cdiv(b8, tb) * tb
    if b_pad != B:
        pad = b_pad - B
        x_in = jnp.pad(x_in, ((0, pad), (0, 0)))
        xm = jnp.pad(xm, ((0, pad), (0, 0)))
        eps = jnp.pad(eps, ((0, pad), (0, 0)))
    n_tiles = b_pad // tb

    # NOTE: for very large B one could cast the weights to bf16 here (keeping
    # preferred_element_type=f32) for 2x MXU throughput on v6e/v7x.
    w_inputs = [params[k] for k in _ARG_ORDER]

    def act_spec(feat):
        return pl.BlockSpec((tb, feat), lambda i: (i, 0))

    def weight_spec(arr):
        # Full array, VMEM-resident across all batch tiles (constant index_map).
        return pl.BlockSpec(arr.shape, lambda i: (0, 0))

    packed = pl.pallas_call(
        functools.partial(cvae_kernel, input_dim=input_dim, latent_dim=latent_dim),
        out_shape=jax.ShapeDtypeStruct((b_pad, packed_dim), jnp.float32),
        grid_spec=pltpu.PrefetchScalarGridSpec(
            num_scalar_prefetch=0,
            grid=(n_tiles,),
            in_specs=[act_spec(input_dim), act_spec(input_dim), act_spec(latent_dim)]
                     + [weight_spec(w) for w in w_inputs],
            out_specs=pl.BlockSpec((tb, packed_dim), lambda i: (i, 0)),
        ),
        compiler_params=pltpu.CompilerParams(dimension_semantics=("parallel",)),
    )(x_in, xm, eps, *w_inputs)

    out = packed[:B, :input_dim].reshape(input_shape)
    mu = packed[:B, input_dim:input_dim + latent_dim]
    sigma = packed[:B, input_dim + latent_dim:]
    return out, mu, sigma


def cvae_forward_ref(x, x_mean, eps, params):
    """Pure-JAX reference mirroring the PyTorch forward (for correctness check)."""
    f32 = jnp.float32
    B = x.shape[0]
    xi = x.reshape(B, -1).astype(f32)
    xm = x_mean.reshape(B, -1).astype(f32)
    p = params
    h = jnp.maximum(jnp.dot(xm, p["emb_w1"], preferred_element_type=f32) + p["emb_b1"], 0.0)
    emb = jnp.maximum(jnp.dot(h, p["emb_w2"], preferred_element_type=f32) + p["emb_b2"], 0.0)
    h2 = jnp.dot(xi, p["enc_wx"], preferred_element_type=f32) \
        + jnp.dot(emb, p["enc_we"], preferred_element_type=f32) + p["enc_b"]
    h2 = jnp.maximum(h2, 0.0)
    ms = jnp.dot(h2, p["ms_w"], preferred_element_type=f32) + p["ms_b"]
    latent = eps.shape[1]
    mu = ms[:, :latent]
    sigma = jnp.exp(ms[:, latent:])
    z = mu + sigma * eps.astype(f32)
    h3 = jnp.dot(z, p["dec_wz"], preferred_element_type=f32) \
        + jnp.dot(emb, p["dec_we"], preferred_element_type=f32) + p["dec_b1"]
    h3 = jnp.maximum(h3, 0.0)
    out = jnp.dot(h3, p["dec_w2"], preferred_element_type=f32) + p["dec_b2"]
    return out.reshape(x.shape), mu, sigma


if __name__ == "__main__":
    # Small config: input_dim=16 (x is [B, 4, 4]), encoder_hidden_dims=[32, 8]
    input_dim = 16
    encoder_hidden_dims = [32, 8]
    latent_dim = encoder_hidden_dims[-1]
    B = 2

    key = jax.random.PRNGKey(0)
    k_x, k_xm, k_eps, k_p = jax.random.split(key, 4)

    x = jax.random.normal(k_x, (B, 4, 4), jnp.float32)            # input_shape = (B, 4, 4)
    x_mean = jax.random.normal(k_xm, (B, 4, 4), jnp.float32)
    # TODO(synk): torch samples N(0,1) internally via torch.distributions.Normal;
    # here the noise is supplied as a deterministic eps input (same semantics).
    eps = jax.random.normal(k_eps, (B, latent_dim), jnp.float32)
    params = init_params(k_p, input_dim, encoder_hidden_dims)

    out, mu, sigma = cvae_forward(x, x_mean, eps, params)
    jax.block_until_ready((out, mu, sigma))

    # Shape / semantic checks against the module spec.
    assert out.shape == x.shape
    assert mu.shape == (B, latent_dim) and sigma.shape == (B, latent_dim)
    assert bool(jnp.all(sigma > 0.0))   # sigma = exp(...) must be positive

    # Numerical check against a pure-JAX reference of the same forward pass.
    out_r, mu_r, sigma_r = cvae_forward_ref(x, x_mean, eps, params)
    assert bool(jnp.allclose(out, out_r, rtol=1e-3, atol=1e-3))
    assert bool(jnp.allclose(mu, mu_r, rtol=1e-3, atol=1e-3))
    assert bool(jnp.allclose(sigma, sigma_r, rtol=1e-3, atol=1e-3))

    print("KERNEL_OK")
</pallas_src>

<mosaic_0001>
module attributes {stable_mosaic.version = 11 : i64} {
  func.func @cvae_kernel(%arg0: i32, %arg1: memref<8x16xf32, #tpu.memory_space<vmem>>, %arg2: memref<8x16xf32, #tpu.memory_space<vmem>>, %arg3: memref<8x8xf32, #tpu.memory_space<vmem>>, %arg4: memref<16x32xf32, #tpu.memory_space<vmem>>, %arg5: memref<1x32xf32, #tpu.memory_space<vmem>>, %arg6: memref<32x8xf32, #tpu.memory_space<vmem>>, %arg7: memref<1x8xf32, #tpu.memory_space<vmem>>, %arg8: memref<16x32xf32, #tpu.memory_space<vmem>>, %arg9: memref<8x32xf32, #tpu.memory_space<vmem>>, %arg10: memref<1x32xf32, #tpu.memory_space<vmem>>, %arg11: memref<32x16xf32, #tpu.memory_space<vmem>>, %arg12: memref<1x16xf32, #tpu.memory_space<vmem>>, %arg13: memref<8x32xf32, #tpu.memory_space<vmem>>, %arg14: memref<8x32xf32, #tpu.memory_space<vmem>>, %arg15: memref<1x32xf32, #tpu.memory_space<vmem>>, %arg16: memref<32x16xf32, #tpu.memory_space<vmem>>, %arg17: memref<1x16xf32, #tpu.memory_space<vmem>>, %arg18: memref<8x32xf32, #tpu.memory_space<vmem>>) attributes {dimension_semantics = [#tpu.dimension_semantics<parallel>], iteration_bounds = array<i64: 1>, scalar_prefetch = 0 : i64, scratch_operands = 0 : i64, tpu.core_type = #tpu.core_type<tc>, window_params = [{transform_indices = @transform_0, window_bounds = array<i64: 8, 16>}, {transform_indices = @transform_1, window_bounds = array<i64: 8, 16>}, {transform_indices = @transform_2, window_bounds = array<i64: 8, 8>}, {pipeline_mode = #tpu.pipeline_mode<synchronous>, transform_indices = @transform_3, window_bounds = array<i64: 16, 32>}, {pipeline_mode = #tpu.pipeline_mode<synchronous>, transform_indices = @transform_4, window_bounds = array<i64: 1, 32>}, {pipeline_mode = #tpu.pipeline_mode<synchronous>, transform_indices = @transform_5, window_bounds = array<i64: 32, 8>}, {pipeline_mode = #tpu.pipeline_mode<synchronous>, transform_indices = @transform_6, window_bounds = array<i64: 1, 8>}, {pipeline_mode = #tpu.pipeline_mode<synchronous>, transform_indices = @transform_7, window_bounds = array<i64: 16, 32>}, {pipeline_mode = #tpu.pipeline_mode<synchronous>, transform_indices = @transform_8, window_bounds = array<i64: 8, 32>}, {pipeline_mode = #tpu.pipeline_mode<synchronous>, transform_indices = @transform_9, window_bounds = array<i64: 1, 32>}, {pipeline_mode = #tpu.pipeline_mode<synchronous>, transform_indices = @transform_10, window_bounds = array<i64: 32, 16>}, {pipeline_mode = #tpu.pipeline_mode<synchronous>, transform_indices = @transform_11, window_bounds = array<i64: 1, 16>}, {pipeline_mode = #tpu.pipeline_mode<synchronous>, transform_indices = @transform_12, window_bounds = array<i64: 8, 32>}, {pipeline_mode = #tpu.pipeline_mode<synchronous>, transform_indices = @transform_13, window_bounds = array<i64: 8, 32>}, {pipeline_mode = #tpu.pipeline_mode<synchronous>, transform_indices = @transform_14, window_bounds = array<i64: 1, 32>}, {pipeline_mode = #tpu.pipeline_mode<synchronous>, transform_indices = @transform_15, window_bounds = array<i64: 32, 16>}, {pipeline_mode = #tpu.pipeline_mode<synchronous>, transform_indices = @transform_16, window_bounds = array<i64: 1, 16>}, {transform_indices = @transform_17, window_bounds = array<i64: 8, 32>}]} {
    %c0 = arith.constant 0 : index
    %c0_0 = arith.constant 0 : index
    %0 = vector.load %arg1[%c0, %c0_0] : memref<8x16xf32, #tpu.memory_space<vmem>>, vector<8x16xf32>
    %c0_1 = arith.constant 0 : index
    %c0_2 = arith.constant 0 : index
    %1 = vector.load %arg2[%c0_1, %c0_2] : memref<8x16xf32, #tpu.memory_space<vmem>>, vector<8x16xf32>
    %c0_3 = arith.constant 0 : index
    %c0_4 = arith.constant 0 : index
    %2 = vector.load %arg3[%c0_3, %c0_4] : memref<8x8xf32, #tpu.memory_space<vmem>>, vector<8x8xf32>
    %c0_5 = arith.constant 0 : index
    %c0_6 = arith.constant 0 : index
    %3 = vector.load %arg4[%c0_5, %c0_6] : memref<16x32xf32, #tpu.memory_space<vmem>>, vector<16x32xf32>
    %cst = arith.constant dense<0.000000e+00> : vector<8x32xf32>
    %4 = tpu.matmul %1, %3, %cst {dimension_numbers = #tpu.dot_dimension_numbers<[1], [0], [0], [1], [0, 0, 1, 1], [], []>} : vector<8x16xf32>, vector<16x32xf32>, vector<8x32xf32> -> vector<8x32xf32>
    %c0_7 = arith.constant 0 : index
    %c0_8 = arith.constant 0 : index
    %5 = vector.load %arg5[%c0_7, %c0_8] : memref<1x32xf32, #tpu.memory_space<vmem>>, vector<1x32xf32>
    %6 = vector.broadcast %5 : vector<1x32xf32> to vector<8x32xf32>
    %7 = arith.addf %4, %6 : vector<8x32xf32>
    %cst_9 = arith.constant 0.000000e+00 : f32
    %8 = vector.broadcast %cst_9 : f32 to vector<8x32xf32>
    %9 = arith.maximumf %7, %8 : vector<8x32xf32>
    %c0_10 = arith.constant 0 : index
    %c0_11 = arith.constant 0 : index
    %10 = vector.load %arg6[%c0_10, %c0_11] : memref<32x8xf32, #tpu.memory_space<vmem>>, vector<32x8xf32>
    %cst_12 = arith.constant dense<0.000000e+00> : vector<8x8xf32>
    %11 = tpu.matmul %9, %10, %cst_12 {dimension_numbers = #tpu.dot_dimension_numbers<[1], [0], [0], [1], [0, 0, 1, 1], [], []>} : vector<8x32xf32>, vector<32x8xf32>, vector<8x8xf32> -> vector<8x8xf32>
    %c0_13 = arith.constant 0 : index
    %c0_14 = arith.constant 0 : index
    %12 = vector.load %arg7[%c0_13, %c0_14] : memref<1x8xf32, #tpu.memory_space<vmem>>, vector<1x8xf32>
    %13 = vector.broadcast %12 : vector<1x8xf32> to vector<8x8xf32>
    %14 = arith.addf %11, %13 : vector<8x8xf32>
    %cst_15 = arith.constant 0.000000e+00 : f32
    %15 = vector.broadcast %cst_15 : f32 to vector<8x8xf32>
    %16 = arith.maximumf %14, %15 : vector<8x8xf32>
    %c0_16 = arith.constant 0 : index
    %c0_17 = arith.constant 0 : index
    %17 = vector.load %arg8[%c0_16, %c0_17] : memref<16x32xf32, #tpu.memory_space<vmem>>, vector<16x32xf32>
    %cst_18 = arith.constant dense<0.000000e+00> : vector<8x32xf32>
    %18 = tpu.matmul %0, %17, %cst_18 {dimension_numbers = #tpu.dot_dimension_numbers<[1], [0], [0], [1], [0, 0, 1, 1], [], []>} : vector<8x16xf32>, vector<16x32xf32>, vector<8x32xf32> -> vector<8x32xf32>
    %c0_19 = arith.constant 0 : index
    %c0_20 = arith.constant 0 : index
    %19 = vector.load %arg9[%c0_19, %c0_20] : memref<8x32xf32, #tpu.memory_space<vmem>>, vector<8x32xf32>
    %cst_21 = arith.constant dense<0.000000e+00> : vector<8x32xf32>
    %20 = tpu.matmul %16, %19, %cst_21 {dimension_numbers = #tpu.dot_dimension_numbers<[1], [0], [0], [1], [0, 0, 1, 1], [], []>} : vector<8x8xf32>, vector<8x32xf32>, vector<8x32xf32> -> vector<8x32xf32>
    %21 = arith.addf %18, %20 : vector<8x32xf32>
    %c0_22 = arith.constant 0 : index
    %c0_23 = arith.constant 0 : index
    %22 = vector.load %arg10[%c0_22, %c0_23] : memref<1x32xf32, #tpu.memory_space<vmem>>, vector<1x32xf32>
    %23 = vector.broadcast %22 : vector<1x32xf32> to vector<8x32xf32>
    %24 = arith.addf %21, %23 : vector<8x32xf32>
    %cst_24 = arith.constant 0.000000e+00 : f32
    %25 = vector.broadcast %cst_24 : f32 to vector<8x32xf32>
    %26 = arith.maximumf %24, %25 : vector<8x32xf32>
    %c0_25 = arith.constant 0 : index
    %c0_26 = arith.constant 0 : index
    %27 = vector.load %arg11[%c0_25, %c0_26] : memref<32x16xf32, #tpu.memory_space<vmem>>, vector<32x16xf32>
    %cst_27 = arith.constant dense<0.000000e+00> : vector<8x16xf32>
    %28 = tpu.matmul %26, %27, %cst_27 {dimension_numbers = #tpu.dot_dimension_numbers<[1], [0], [0], [1], [0, 0, 1, 1], [], []>} : vector<8x32xf32>, vector<32x16xf32>, vector<8x16xf32> -> vector<8x16xf32>
    %c0_28 = arith.constant 0 : index
    %c0_29 = arith.constant 0 : index
    %29 = vector.load %arg12[%c0_28, %c0_29] : memref<1x16xf32, #tpu.memory_space<vmem>>, vector<1x16xf32>
    %30 = vector.broadcast %29 : vector<1x16xf32> to vector<8x16xf32>
    %31 = arith.addf %28, %30 : vector<8x16xf32>
    %32 = vector.extract_strided_slice %31 {offsets = [0, 0], sizes = [8, 8], strides = [1, 1]} : vector<8x16xf32> to vector<8x8xf32>
    %33 = vector.extract_strided_slice %31 {offsets = [0, 8], sizes = [8, 8], strides = [1, 1]} : vector<8x16xf32> to vector<8x8xf32>
    %34 = math.exp %33 : vector<8x8xf32>
    %35 = arith.mulf %34, %2 : vector<8x8xf32>
    %36 = arith.addf %32, %35 : vector<8x8xf32>
    %c0_30 = arith.constant 0 : index
    %c0_31 = arith.constant 0 : index
    %37 = vector.load %arg13[%c0_30, %c0_31] : memref<8x32xf32, #tpu.memory_space<vmem>>, vector<8x32xf32>
    %cst_32 = arith.constant dense<0.000000e+00> : vector<8x32xf32>
    %38 = tpu.matmul %36, %37, %cst_32 {dimension_numbers = #tpu.dot_dimension_numbers<[1], [0], [0], [1], [0, 0, 1, 1], [], []>} : vector<8x8xf32>, vector<8x32xf32>, vector<8x32xf32> -> vector<8x32xf32>
    %c0_33 = arith.constant 0 : index
    %c0_34 = arith.constant 0 : index
    %39 = vector.load %arg14[%c0_33, %c0_34] : memref<8x32xf32, #tpu.memory_space<vmem>>, vector<8x32xf32>
    %cst_35 = arith.constant dense<0.000000e+00> : vector<8x32xf32>
    %40 = tpu.matmul %16, %39, %cst_35 {dimension_numbers = #tpu.dot_dimension_numbers<[1], [0], [0], [1], [0, 0, 1, 1], [], []>} : vector<8x8xf32>, vector<8x32xf32>, vector<8x32xf32> -> vector<8x32xf32>
    %41 = arith.addf %38, %40 : vector<8x32xf32>
    %c0_36 = arith.constant 0 : index
    %c0_37 = arith.constant 0 : index
    %42 = vector.load %arg15[%c0_36, %c0_37] : memref<1x32xf32, #tpu.memory_space<vmem>>, vector<1x32xf32>
    %43 = vector.broadcast %42 : vector<1x32xf32> to vector<8x32xf32>
    %44 = arith.addf %41, %43 : vector<8x32xf32>
    %cst_38 = arith.constant 0.000000e+00 : f32
    %45 = vector.broadcast %cst_38 : f32 to vector<8x32xf32>
    %46 = arith.maximumf %44, %45 : vector<8x32xf32>
    %c0_39 = arith.constant 0 : index
    %c0_40 = arith.constant 0 : index
    %47 = vector.load %arg16[%c0_39, %c0_40] : memref<32x16xf32, #tpu.memory_space<vmem>>, vector<32x16xf32>
    %cst_41 = arith.constant dense<0.000000e+00> : vector<8x16xf32>
    %48 = tpu.matmul %46, %47, %cst_41 {dimension_numbers = #tpu.dot_dimension_numbers<[1], [0], [0], [1], [0, 0, 1, 1], [], []>} : vector<8x32xf32>, vector<32x16xf32>, vector<8x16xf32> -> vector<8x16xf32>
    %c0_42 = arith.constant 0 : index
    %c0_43 = arith.constant 0 : index
    %49 = vector.load %arg17[%c0_42, %c0_43] : memref<1x16xf32, #tpu.memory_space<vmem>>, vector<1x16xf32>
    %50 = vector.broadcast %49 : vector<1x16xf32> to vector<8x16xf32>
    %51 = arith.addf %48, %50 : vector<8x16xf32>
    %52 = tpu.concatenate %51, %32, %34 in 1 : vector<8x16xf32>, vector<8x8xf32>, vector<8x8xf32> -> vector<8x32xf32>
    %c0_44 = arith.constant 0 : index
    %c0_45 = arith.constant 0 : index
    %53 = vector.load %arg18[%c0_44, %c0_45] : memref<8x32xf32, #tpu.memory_space<vmem>>, vector<8x32xf32>
    tpu.vector_store %arg18[%c0_44, %c0_45], %52 {strides = array<i32>} : memref<8x32xf32, #tpu.memory_space<vmem>>, vector<8x32xf32>,
    return
  }
  func.func @transform_0(%arg0: i32) -> (i32, i32) {
    %c0_i32 = arith.constant 0 : i32
    %c0_i32_0 = arith.constant 0 : i32
    return %arg0, %c0_i32 : i32, i32
  }
  func.func @transform_1(%arg0: i32) -> (i32, i32) {
    %c0_i32 = arith.constant 0 : i32
    %c0_i32_0 = arith.constant 0 : i32
    return %arg0, %c0_i32 : i32, i32
  }
  func.func @transform_2(%arg0: i32) -> (i32, i32) {
    %c0_i32 = arith.constant 0 : i32
    %c0_i32_0 = arith.constant 0 : i32
    return %arg0, %c0_i32 : i32, i32
  }
  func.func @transform_3(%arg0: i32) -> (i32, i32) {
    %c0_i32 = arith.constant 0 : i32
    %c0_i32_0 = arith.constant 0 : i32
    %c0_i32_1 = arith.constant 0 : i32
    return %c0_i32, %c0_i32_0 : i32, i32
  }
  func.func @transform_4(%arg0: i32) -> (i32, i32) {
    %c0_i32 = arith.constant 0 : i32
    %c0_i32_0 = arith.constant 0 : i32
    %c0_i32_1 = arith.constant 0 : i32
    return %c0_i32, %c0_i32_0 : i32, i32
  }
  func.func @transform_5(%arg0: i32) -> (i32, i32) {
    %c0_i32 = arith.constant 0 : i32
    %c0_i32_0 = arith.constant 0 : i32
    %c0_i32_1 = arith.constant 0 : i32
    return %c0_i32, %c0_i32_0 : i32, i32
  }
  func.func @transform_6(%arg0: i32) -> (i32, i32) {
    %c0_i32 = arith.constant 0 : i32
    %c0_i32_0 = arith.constant 0 : i32
    %c0_i32_1 = arith.constant 0 : i32
    return %c0_i32, %c0_i32_0 : i32, i32
  }
  func.func @transform_7(%arg0: i32) -> (i32, i32) {
    %c0_i32 = arith.constant 0 : i32
    %c0_i32_0 = arith.constant 0 : i32
    %c0_i32_1 = arith.constant 0 : i32
    return %c0_i32, %c0_i32_0 : i32, i32
  }
  func.func @transform_8(%arg0: i32) -> (i32, i32) {
    %c0_i32 = arith.constant 0 : i32
    %c0_i32_0 = arith.constant 0 : i32
    %c0_i32_1 = arith.constant 0 : i32
    return %c0_i32, %c0_i32_0 : i32, i32
  }
  func.func @transform_9(%arg0: i32) -> (i32, i32) {
    %c0_i32 = arith.constant 0 : i32
    %c0_i32_0 = arith.constant 0 : i32
    %c0_i32_1 = arith.constant 0 : i32
    return %c0_i32, %c0_i32_0 : i32, i32
  }
  func.func @transform_10(%arg0: i32) -> (i32, i32) {
    %c0_i32 = arith.constant 0 : i32
    %c0_i32_0 = arith.constant 0 : i32
    %c0_i32_1 = arith.constant 0 : i32
    return %c0_i32, %c0_i32_0 : i32, i32
  }
  func.func @transform_11(%arg0: i32) -> (i32, i32) {
    %c0_i32 = arith.constant 0 : i32
    %c0_i32_0 = arith.constant 0 : i32
    %c0_i32_1 = arith.constant 0 : i32
    return %c0_i32, %c0_i32_0 : i32, i32
  }
  func.func @transform_12(%arg0: i32) -> (i32, i32) {
    %c0_i32 = arith.constant 0 : i32
    %c0_i32_0 = arith.constant 0 : i32
    %c0_i32_1 = arith.constant 0 : i32
    return %c0_i32, %c0_i32_0 : i32, i32
  }
  func.func @transform_13(%arg0: i32) -> (i32, i32) {
    %c0_i32 = arith.constant 0 : i32
    %c0_i32_0 = arith.constant 0 : i32
    %c0_i32_1 = arith.constant 0 : i32
    return %c0_i32, %c0_i32_0 : i32, i32
  }
  func.func @transform_14(%arg0: i32) -> (i32, i32) {
    %c0_i32 = arith.constant 0 : i32
    %c0_i32_0 = arith.constant 0 : i32
    %c0_i32_1 = arith.constant 0 : i32
    return %c0_i32, %c0_i32_0 : i32, i32
  }
  func.func @transform_15(%arg0: i32) -> (i32, i32) {
    %c0_i32 = arith.constant 0 : i32
    %c0_i32_0 = arith.constant 0 : i32
    %c0_i32_1 = arith.constant 0 : i32
    return %c0_i32, %c0_i32_0 : i32, i32
  }
  func.func @transform_16(%arg0: i32) -> (i32, i32) {
    %c0_i32 = arith.constant 0 : i32
    %c0_i32_0 = arith.constant 0 : i32
    %c0_i32_1 = arith.constant 0 : i32
    return %c0_i32, %c0_i32_0 : i32, i32
  }
  func.func @transform_17(%arg0: i32) -> (i32, i32) {
    %c0_i32 = arith.constant 0 : i32
    %c0_i32_0 = arith.constant 0 : i32
    return %arg0, %c0_i32 : i32, i32
  }
}

</mosaic_0001>

<llo_original>
// kernel: tpu_custom_call.1
$region0: #{tpu_custom_call.1}
  #allocation0 [shape = 'u32[]', space=smem, size = 0x4, offset = 0x4, fixed_abs, tag = 'smem constant byte address 0x4 - core index']
  #allocation1 [shape = 'u32[144,128]{1,0:T(1,128)}', space=vmem, size = 0x12000, scoped, tag = 'internal scratch']
  %s0 = inlined_call_operand.vmem [shape: f32[8,16], index: 0, kind: input, shape index: {}]
  %s1 = inlined_call_operand.vmem [shape: f32[8,16], index: 1, kind: input, shape index: {}]
  %s2 = inlined_call_operand.vmem [shape: f32[8,8], index: 2, kind: input, shape index: {}]
  %s3 = inlined_call_operand.vmem [shape: f32[16,32], index: 3, kind: input, shape index: {}]
  %s4 = inlined_call_operand.vmem [shape: f32[1,32], index: 4, kind: input, shape index: {}]
  %s5 = inlined_call_operand.vmem [shape: f32[32,8], index: 5, kind: input, shape index: {}]
  %s6 = inlined_call_operand.vmem [shape: f32[1,8], index: 6, kind: input, shape index: {}]
  %s7 = inlined_call_operand.vmem [shape: f32[16,32], index: 7, kind: input, shape index: {}]
  %s8 = inlined_call_operand.vmem [shape: f32[8,32], index: 8, kind: input, shape index: {}]
  %s9 = inlined_call_operand.vmem [shape: f32[1,32], index: 9, kind: input, shape index: {}]
  %s10 = inlined_call_operand.vmem [shape: f32[32,16], index: 10, kind: input, shape index: {}]
  %s11 = inlined_call_operand.vmem [shape: f32[1,16], index: 11, kind: input, shape index: {}]
  %s12 = inlined_call_operand.vmem [shape: f32[8,32], index: 12, kind: input, shape index: {}]
  %s13 = inlined_call_operand.vmem [shape: f32[8,32], index: 13, kind: input, shape index: {}]
  %s14 = inlined_call_operand.vmem [shape: f32[1,32], index: 14, kind: input, shape index: {}]
  %s15 = inlined_call_operand.vmem [shape: f32[32,16], index: 15, kind: input, shape index: {}]
  %s16 = inlined_call_operand.vmem [shape: f32[1,16], index: 16, kind: input, shape index: {}]
  %s17 = inlined_call_operand.hbm [shape: f32[8,32], index: 17, kind: output, shape index: {}]
  %s18 = sld [smem:[#allocation0]]
  $region78: #{tpu_custom_call.1} parent=0
    _
  %s20 = ssub.s32 1, %s18
  %s21 = scalar_select 0, %s20, %s18
  $region1: #{tpu_custom_call.1} parent=0
    #allocation2 [shape = 'u8[4096]{0}', space=vmem, size = 0x1000, scoped, tag = 'output window, operand 0, single buffered']
    #allocation3 [shape = 's32[1]{0}', space=sflag, size = 0x4, scoped, tag = 'scoped memory for tpu_custom_call.1']
    %22 = vsyncpa [#allocation3], 0
    // Predicated region
    $region2: #{tpu_custom_call.1} parent=1 // pred_check
      _
    $region3: #{tpu_custom_call.1} parent=1 // pred_check_branch
      %24 = sbr.rel (0) target = $region5
    $region4: #{tpu_custom_call.1} parent=1 // pred_region
      _
    $region5: #{tpu_custom_call.1} parent=1 // pred_fallthru
      _
    // Predicated region
    $region6: #{tpu_custom_call.1} parent=1 // pred_check
      _
    $region7: #{tpu_custom_call.1} parent=1 // pred_check_branch
      %26 = sbr.rel (0) target = $region9
    $region8: #{tpu_custom_call.1} parent=1 // pred_region
      _
    $region9: #{tpu_custom_call.1} parent=1 // pred_fallthru
      _
    // Predicated region
    $region10: #{tpu_custom_call.1} parent=1 // pred_check
      _
    $region11: #{tpu_custom_call.1} parent=1 // pred_check_branch
      %28 = sbr.rel (0) target = $region13
    $region12: #{tpu_custom_call.1} parent=1 // pred_region
      _
    $region13: #{tpu_custom_call.1} parent=1 // pred_fallthru
      _
    // Predicated region
    $region14: #{tpu_custom_call.1} parent=1 // pred_check
      _
    $region15: #{tpu_custom_call.1} parent=1 // pred_check_branch
      %30 = sbr.rel (0) target = $region17
    $region16: #{tpu_custom_call.1} parent=1 // pred_region
      _
    $region17: #{tpu_custom_call.1} parent=1 // pred_fallthru
      _
    // Predicated region
    $region18: #{tpu_custom_call.1} parent=1 // pred_check
      _
    $region19: #{tpu_custom_call.1} parent=1 // pred_check_branch
      %32 = sbr.rel (0) target = $region21
    $region20: #{tpu_custom_call.1} parent=1 // pred_region
      _
    $region21: #{tpu_custom_call.1} parent=1 // pred_fallthru
      _
    // Predicated region
    $region22: #{tpu_custom_call.1} parent=1 // pred_check
      _
    $region23: #{tpu_custom_call.1} parent=1 // pred_check_branch
      %34 = sbr.rel (0) target = $region25
    $region24: #{tpu_custom_call.1} parent=1 // pred_region
      _
    $region25: #{tpu_custom_call.1} parent=1 // pred_fallthru
      _
    // Predicated region
    $region26: #{tpu_custom_call.1} parent=1 // pred_check
      _
    $region27: #{tpu_custom_call.1} parent=1 // pred_check_branch
      %36 = sbr.rel (0) target = $region29
    $region28: #{tpu_custom_call.1} parent=1 // pred_region
      _
    $region29: #{tpu_custom_call.1} parent=1 // pred_fallthru
      _
    // Predicated region
    $region30: #{tpu_custom_call.1} parent=1 // pred_check
      _
    $region31: #{tpu_custom_call.1} parent=1 // pred_check_branch
      %38 = sbr.rel (0) target = $region33
    $region32: #{tpu_custom_call.1} parent=1 // pred_region
      _
    $region33: #{tpu_custom_call.1} parent=1 // pred_fallthru
      _
    // Predicated region
    $region34: #{tpu_custom_call.1} parent=1 // pred_check
      _
    $region35: #{tpu_custom_call.1} parent=1 // pred_check_branch
      %40 = sbr.rel (0) target = $region37
    $region36: #{tpu_custom_call.1} parent=1 // pred_region
      _
    $region37: #{tpu_custom_call.1} parent=1 // pred_fallthru
      _
    // Predicated region
    $region38: #{tpu_custom_call.1} parent=1 // pred_check
      _
    $region39: #{tpu_custom_call.1} parent=1 // pred_check_branch
      %42 = sbr.rel (0) target = $region41
    $region40: #{tpu_custom_call.1} parent=1 // pred_region
      _
    $region41: #{tpu_custom_call.1} parent=1 // pred_fallthru
      _
    // Predicated region
    $region42: #{tpu_custom_call.1} parent=1 // pred_check
      _
    $region43: #{tpu_custom_call.1} parent=1 // pred_check_branch
      %44 = sbr.rel (0) target = $region45
    $region44: #{tpu_custom_call.1} parent=1 // pred_region
      _
    $region45: #{tpu_custom_call.1} parent=1 // pred_fallthru
      _
    // Predicated region
    $region46: #{tpu_custom_call.1} parent=1 // pred_check
      _
    $region47: #{tpu_custom_call.1} parent=1 // pred_check_branch
      %46 = sbr.rel (0) target = $region49
    $region48: #{tpu_custom_call.1} parent=1 // pred_region
      _
    $region49: #{tpu_custom_call.1} parent=1 // pred_fallthru
      _
    // Predicated region
    $region50: #{tpu_custom_call.1} parent=1 // pred_check
      _
    $region51: #{tpu_custom_call.1} parent=1 // pred_check_branch
      %48 = sbr.rel (0) target = $region53
    $region52: #{tpu_custom_call.1} parent=1 // pred_region
      _
    $region53: #{tpu_custom_call.1} parent=1 // pred_fallthru
      _
    // Predicated region
    $region54: #{tpu_custom_call.1} parent=1 // pred_check
      _
    $region55: #{tpu_custom_call.1} parent=1 // pred_check_branch
      %50 = sbr.rel (0) target = $region57
    $region56: #{tpu_custom_call.1} parent=1 // pred_region
      _
    $region57: #{tpu_custom_call.1} parent=1 // pred_fallthru
      _
    // Predicated region
    $region58: #{tpu_custom_call.1} parent=1 // pred_check
      _
    $region59: #{tpu_custom_call.1} parent=1 // pred_check_branch
      %52 = sbr.rel (0) target = $region61
    $region60: #{tpu_custom_call.1} parent=1 // pred_region
      _
    $region61: #{tpu_custom_call.1} parent=1 // pred_fallthru
      _
    // Predicated region
    $region62: #{tpu_custom_call.1} parent=1 // pred_check
      _
    $region63: #{tpu_custom_call.1} parent=1 // pred_check_branch
      %54 = sbr.rel (0) target = $region65
    $region64: #{tpu_custom_call.1} parent=1 // pred_region
      _
    $region65: #{tpu_custom_call.1} parent=1 // pred_fallthru
      _
    // Predicated region
    $region66: #{tpu_custom_call.1} parent=1 // pred_check
      _
    $region67: #{tpu_custom_call.1} parent=1 // pred_check_branch
      %56 = sbr.rel (0) target = $region69
    $region68: #{tpu_custom_call.1} parent=1 // pred_region
      _
    $region69: #{tpu_custom_call.1} parent=1 // pred_fallthru
      _
    %v57 = vld [vmem:[%s0] sm:$0xff]
    %v58 = vld [vmem:[%s1] sm:$0xff]
    %v59 = vld [vmem:[%s2] sm:$0xff]
    %v60 = vld [vmem:[%s3] sm:$0xff]
    %v61 = vld [vmem:[%s3 + $0x8] sm:$0xff]
    %v62 = vld [vmem:[%s4] sm:$0x1]
    %v64 = vlaneseq
    %v65 = vshrl.u32 %v64, 7
    %v66 = vsub.s32 0, %v65
    %v67 = vrot.slane %v62, %v66
    %vm69 = vcmask 130048
    %v71 = vsel %vm69, %v58, 0
    %73 = vmatprep.subr.mxu0 0.0
    %74 = vmatpush1.msra.mxu0 0.0
    %75 = vmatprep.subr.mxu0 0.0
    %76 = vmatpush1.msra.mxu0 0.0
    %77 = vmatprep.subr.mxu0 0.0
    %78 = vmatpush1.msra.mxu0 0.0
    %79 = vmatprep.subr.mxu0 0.0
    %80 = vmatpush1.msra.mxu0 0.0
    %81 = vmatprep.subr.mxu0 0.0
    %82 = vmatpush1.msra.mxu0 0.0
    %83 = vmatprep.subr.mxu0 0.0
    %84 = vmatpush1.msra.mxu0 0.0
    %85 = vmatprep.subr.mxu0 0.0
    %86 = vmatpush1.msra.mxu0 0.0
    %87 = vmatprep.subr.mxu0 0.0
    %88 = vmatpush1.msra.mxu0 0.0
    %89 = vmatprep.subr.mxu0 0.0
    %90 = vmatpush1.msra.mxu0 0.0
    %91 = vmatprep.subr.mxu0 0.0
    %92 = vmatpush1.msra.mxu0 0.0
    %93 = vmatprep.subr.mxu0 0.0
    %94 = vmatpush1.msra.mxu0 0.0
    %95 = vmatprep.subr.mxu0 0.0
    %96 = vmatpush1.msra.mxu0 0.0
    %97 = vmatprep.subr.mxu0 0.0
    %98 = vmatpush1.msra.mxu0 0.0
    %99 = vmatprep.subr.mxu0 0.0
    %100 = vmatpush1.msra.mxu0 0.0
    %101 = vmatprep.subr.mxu0 0.0
    %102 = vmatpush1.msra.mxu0 %v61
    %103 = vmatprep.subr.mxu0 0.0
    %104 = vmatpush1.msra.mxu0 %v60
    %105 = vmatprep.subr.mxu0 0.0
    %106 = vmatpush2.msra.mxu0 0.0
    %107 = vmatprep.subr.mxu0 0.0
    %108 = vmatpush2.msra.mxu0 0.0
    %109 = vmatprep.subr.mxu0 0.0
    %110 = vmatpush2.msra.mxu0 0.0
    %111 = vmatprep.subr.mxu0 0.0
    %112 = vmatpush2.msra.mxu0 0.0
    %113 = vmatprep.subr.mxu0 0.0
    %114 = vmatpush2.msra.mxu0 0.0
    %115 = vmatprep.subr.mxu0 0.0
    %116 = vmatpush2.msra.mxu0 0.0
    %117 = vmatprep.subr.mxu0 0.0
    %118 = vmatpush2.msra.mxu0 0.0
    %119 = vmatprep.subr.mxu0 0.0
    %120 = vmatpush2.msra.mxu0 0.0
    %121 = vmatprep.subr.mxu0 0.0
    %122 = vmatpush2.msra.mxu0 0.0
    %123 = vmatprep.subr.mxu0 0.0
    %124 = vmatpush2.msra.mxu0 0.0
    %125 = vmatprep.subr.mxu0 0.0
    %126 = vmatpush2.msra.mxu0 0.0
    %127 = vmatprep.subr.mxu0 0.0
    %128 = vmatpush2.msra.mxu0 0.0
    %129 = vmatprep.subr.mxu0 0.0
    %130 = vmatpush2.msra.mxu0 0.0
    %131 = vmatprep.subr.mxu0 0.0
    %132 = vmatpush2.msra.mxu0 0.0
    %133 = vmatprep.subr.mxu0 0.0
    %134 = vmatpush2.msra.mxu0 0.0
    %135 = vmatprep.subr.mxu0 0.0
    %136 = vmatpush2.msra.mxu0 0.0
    %137 = vmatprep.mubr.f32.mxu0 0.0
    %138 = vmatmul.mubr.f32.gmra.mxu0 %v71
    %v139 = vpop.f32.mrf.mxu0
    %v140 = vadd.f32 %v67, %v139
    %v141 = vpop.f32.mrf.mxu0
    %142 = vdwg.mxu0
    %v143 = vmax.f32 %v140, 0.0
    %v144 = vld [vmem:[%s5] sm:$0xff]
    %v145 = vld [vmem:[%s5 + $0x8] sm:$0xff]
    %v146 = vld [vmem:[%s5 + $0x10] sm:$0xff]
    %v147 = vld [vmem:[%s5 + $0x18] sm:$0xff]
    %v148 = vld [vmem:[%s6] sm:$0x1]
    %v150 = vlaneseq
    %v151 = vshrl.u32 %v150, 7
    %v152 = vsub.s32 0, %v151
    %v153 = vrot.slane %v148, %v152
    %vm155 = vcmask 261120
    %v157 = vsel %vm155, %v143, 0
    %159 = vmatprep.subr.mxu0 0.0
    %160 = vmatpush1.msra.mxu0 0.0
    %161 = vmatprep.subr.mxu0 0.0
    %162 = vmatpush1.msra.mxu0 0.0
    %163 = vmatprep.subr.mxu0 0.0
    %164 = vmatpush1.msra.mxu0 0.0
    %165 = vmatprep.subr.mxu0 0.0
    %166 = vmatpush1.msra.mxu0 0.0
    %167 = vmatprep.subr.mxu0 0.0
    %168 = vmatpush1.msra.mxu0 0.0
    %169 = vmatprep.subr.mxu0 0.0
    %170 = vmatpush1.msra.mxu0 0.0
    %171 = vmatprep.subr.mxu0 0.0
    %172 = vmatpush1.msra.mxu0 0.0
    %173 = vmatprep.subr.mxu0 0.0
    %174 = vmatpush1.msra.mxu0 0.0
    %175 = vmatprep.subr.mxu0 0.0
    %176 = vmatpush1.msra.mxu0 0.0
    %177 = vmatprep.subr.mxu0 0.0
    %178 = vmatpush1.msra.mxu0 0.0
    %179 = vmatprep.subr.mxu0 0.0
    %180 = vmatpush1.msra.mxu0 0.0
    %181 = vmatprep.subr.mxu0 0.0
    %182 = vmatpush1.msra.mxu0 0.0
    %183 = vmatprep.subr.mxu0 0.0
    %184 = vmatpush1.msra.mxu0 %v147
    %185 = vmatprep.subr.mxu0 0.0
    %186 = vmatpush1.msra.mxu0 %v146
    %187 = vmatprep.subr.mxu0 0.0
    %188 = vmatpush1.msra.mxu0 %v145
    %189 = vmatprep.subr.mxu0 0.0
    %190 = vmatpush1.msra.mxu0 %v144
    %191 = vmatprep.subr.mxu0 0.0
    %192 = vmatpush2.msra.mxu0 0.0
    %193 = vmatprep.subr.mxu0 0.0
    %194 = vmatpush2.msra.mxu0 0.0
    %195 = vmatprep.subr.mxu0 0.0
    %196 = vmatpush2.msra.mxu0 0.0
    %197 = vmatprep.subr.mxu0 0.0
    %198 = vmatpush2.msra.mxu0 0.0
    %199 = vmatprep.subr.mxu0 0.0
    %200 = vmatpush2.msra.mxu0 0.0
    %201 = vmatprep.subr.mxu0 0.0
    %202 = vmatpush2.msra.mxu0 0.0
    %203 = vmatprep.subr.mxu0 0.0
    %204 = vmatpush2.msra.mxu0 0.0
    %205 = vmatprep.subr.mxu0 0.0
    %206 = vmatpush2.msra.mxu0 0.0
    %207 = vmatprep.subr.mxu0 0.0
    %208 = vmatpush2.msra.mxu0 0.0
    %209 = vmatprep.subr.mxu0 0.0
    %210 = vmatpush2.msra.mxu0 0.0
    %211 = vmatprep.subr.mxu0 0.0
    %212 = vmatpush2.msra.mxu0 0.0
    %213 = vmatprep.subr.mxu0 0.0
    %214 = vmatpush2.msra.mxu0 0.0
    %215 = vmatprep.subr.mxu0 0.0
    %216 = vmatpush2.msra.mxu0 0.0
    %217 = vmatprep.subr.mxu0 0.0
    %218 = vmatpush2.msra.mxu0 0.0
    %219 = vmatprep.subr.mxu0 0.0
    %220 = vmatpush2.msra.mxu0 0.0
    %221 = vmatprep.subr.mxu0 0.0
    %222 = vmatpush2.msra.mxu0 0.0
    %223 = vmatprep.mubr.f32.mxu0 0.0
    %224 = vmatmul.mubr.f32.gmra.mxu0 %v157
    %v225 = vpop.f32.mrf.mxu0
    %v226 = vadd.f32 %v153, %v225
    %v227 = vpop.f32.mrf.mxu0
    %228 = vdwg.mxu0
    %v229 = vmax.f32 %v226, 0.0
    %v230 = vld [vmem:[%s7] sm:$0xff]
    %v231 = vld [vmem:[%s7 + $0x8] sm:$0xff]
    %v232 = vld [vmem:[%s8] sm:$0xff]
    %vm233 = vcmask 64512
    %v235 = vsel %vm233, %v229, 0
    %237 = vmatprep.subr.mxu0 0.0
    %238 = vmatpush1.msra.mxu0 0.0
    %239 = vmatprep.subr.mxu0 0.0
    %240 = vmatpush1.msra.mxu0 0.0
    %241 = vmatprep.subr.mxu0 0.0
    %242 = vmatpush1.msra.mxu0 0.0
    %243 = vmatprep.subr.mxu0 0.0
    %244 = vmatpush1.msra.mxu0 0.0
    %245 = vmatprep.subr.mxu0 0.0
    %246 = vmatpush1.msra.mxu0 0.0
    %247 = vmatprep.subr.mxu0 0.0
    %248 = vmatpush1.msra.mxu0 0.0
    %249 = vmatprep.subr.mxu0 0.0
    %250 = vmatpush1.msra.mxu0 0.0
    %251 = vmatprep.subr.mxu0 0.0
    %252 = vmatpush1.msra.mxu0 0.0
    %253 = vmatprep.subr.mxu0 0.0
    %254 = vmatpush1.msra.mxu0 0.0
    %255 = vmatprep.subr.mxu0 0.0
    %256 = vmatpush1.msra.mxu0 0.0
    %257 = vmatprep.subr.mxu0 0.0
    %258 = vmatpush1.msra.mxu0 0.0
    %259 = vmatprep.subr.mxu0 0.0
    %260 = vmatpush1.msra.mxu0 0.0
    %261 = vmatprep.subr.mxu0 0.0
    %262 = vmatpush1.msra.mxu0 0.0
    %263 = vmatprep.subr.mxu0 0.0
    %264 = vmatpush1.msra.mxu0 0.0
    %265 = vmatprep.subr.mxu0 0.0
    %266 = vmatpush1.msra.mxu0 0.0
    %267 = vmatprep.subr.mxu0 0.0
    %268 = vmatpush1.msra.mxu0 %v232
    %269 = vmatprep.subr.mxu0 0.0
    %270 = vmatpush2.msra.mxu0 0.0
    %271 = vmatprep.subr.mxu0 0.0
    %272 = vmatpush2.msra.mxu0 0.0
    %273 = vmatprep.subr.mxu0 0.0
    %274 = vmatpush2.msra.mxu0 0.0
    %275 = vmatprep.subr.mxu0 0.0
    %276 = vmatpush2.msra.mxu0 0.0
    %277 = vmatprep.subr.mxu0 0.0
    %278 = vmatpush2.msra.mxu0 0.0
    %279 = vmatprep.subr.mxu0 0.0
    %280 = vmatpush2.msra.mxu0 0.0
    %281 = vmatprep.subr.mxu0 0.0
    %282 = vmatpush2.msra.mxu0 0.0
    %283 = vmatprep.subr.mxu0 0.0
    %284 = vmatpush2.msra.mxu0 0.0
    %285 = vmatprep.subr.mxu0 0.0
    %286 = vmatpush2.msra.mxu0 0.0
    %287 = vmatprep.subr.mxu0 0.0
    %288 = vmatpush2.msra.mxu0 0.0
    %289 = vmatprep.subr.mxu0 0.0
    %290 = vmatpush2.msra.mxu0 0.0
    %291 = vmatprep.subr.mxu0 0.0
    %292 = vmatpush2.msra.mxu0 0.0
    %293 = vmatprep.subr.mxu0 0.0
    %294 = vmatpush2.msra.mxu0 0.0
    %295 = vmatprep.subr.mxu0 0.0
    %296 = vmatpush2.msra.mxu0 0.0
    %297 = vmatprep.subr.mxu0 0.0
    %298 = vmatpush2.msra.mxu0 0.0
    %299 = vmatprep.subr.mxu0 0.0
    %300 = vmatpush2.msra.mxu0 0.0
    %301 = vmatprep.mubr.f32.mxu0 0.0
    %302 = vmatmul.mubr.f32.gmra.mxu0 %v235
    %v303 = vpop.f32.mrf.mxu0
    %v304 = vadd.f32 0.0, %v303
    %v305 = vpop.f32.mrf.mxu0
    %306 = vdwg.mxu0
    %v308 = vsel %vm69, %v57, 0
    %310 = vmatprep.subr.mxu0 0.0
    %311 = vmatpush1.msra.mxu0 0.0
    %312 = vmatprep.subr.mxu0 0.0
    %313 = vmatpush1.msra.mxu0 0.0
    %314 = vmatprep.subr.mxu0 0.0
    %315 = vmatpush1.msra.mxu0 0.0
    %316 = vmatprep.subr.mxu0 0.0
    %317 = vmatpush1.msra.mxu0 0.0
    %318 = vmatprep.subr.mxu0 0.0
    %319 = vmatpush1.msra.mxu0 0.0
    %320 = vmatprep.subr.mxu0 0.0
    %321 = vmatpush1.msra.mxu0 0.0
    %322 = vmatprep.subr.mxu0 0.0
    %323 = vmatpush1.msra.mxu0 0.0
    %324 = vmatprep.subr.mxu0 0.0
    %325 = vmatpush1.msra.mxu0 0.0
    %326 = vmatprep.subr.mxu0 0.0
    %327 = vmatpush1.msra.mxu0 0.0
    %328 = vmatprep.subr.mxu0 0.0
    %329 = vmatpush1.msra.mxu0 0.0
    %330 = vmatprep.subr.mxu0 0.0
    %331 = vmatpush1.msra.mxu0 0.0
    %332 = vmatprep.subr.mxu0 0.0
    %333 = vmatpush1.msra.mxu0 0.0
    %334 = vmatprep.subr.mxu0 0.0
    %335 = vmatpush1.msra.mxu0 0.0
    %336 = vmatprep.subr.mxu0 0.0
    %337 = vmatpush1.msra.mxu0 0.0
    %338 = vmatprep.subr.mxu0 0.0
    %339 = vmatpush1.msra.mxu0 %v231
    %340 = vmatprep.subr.mxu0 0.0
    %341 = vmatpush1.msra.mxu0 %v230
    %342 = vmatprep.subr.mxu0 0.0
    %343 = vmatpush2.msra.mxu0 0.0
    %344 = vmatprep.subr.mxu0 0.0
    %345 = vmatpush2.msra.mxu0 0.0
    %346 = vmatprep.subr.mxu0 0.0
    %347 = vmatpush2.msra.mxu0 0.0
    %348 = vmatprep.subr.mxu0 0.0
    %349 = vmatpush2.msra.mxu0 0.0
    %350 = vmatprep.subr.mxu0 0.0
    %351 = vmatpush2.msra.mxu0 0.0
    %352 = vmatprep.subr.mxu0 0.0
    %353 = vmatpush2.msra.mxu0 0.0
    %354 = vmatprep.subr.mxu0 0.0
    %355 = vmatpush2.msra.mxu0 0.0
    %356 = vmatprep.subr.mxu0 0.0
    %357 = vmatpush2.msra.mxu0 0.0
    %358 = vmatprep.subr.mxu0 0.0
    %359 = vmatpush2.msra.mxu0 0.0
    %360 = vmatprep.subr.mxu0 0.0
    %361 = vmatpush2.msra.mxu0 0.0
    %362 = vmatprep.subr.mxu0 0.0
    %363 = vmatpush2.msra.mxu0 0.0
    %364 = vmatprep.subr.mxu0 0.0
    %365 = vmatpush2.msra.mxu0 0.0
    %366 = vmatprep.subr.mxu0 0.0
    %367 = vmatpush2.msra.mxu0 0.0
    %368 = vmatprep.subr.mxu0 0.0
    %369 = vmatpush2.msra.mxu0 0.0
    %370 = vmatprep.subr.mxu0 0.0
    %371 = vmatpush2.msra.mxu0 0.0
    %372 = vmatprep.subr.mxu0 0.0
    %373 = vmatpush2.msra.mxu0 0.0
    %374 = vmatprep.mubr.f32.mxu0 0.0
    %375 = vmatmul.mubr.f32.gmra.mxu0 %v308
    %v376 = vpop.f32.mrf.mxu0
    %v377 = vadd.f32 %v304, %v376
    %v378 = vpop.f32.mrf.mxu0
    %379 = vdwg.mxu0
    %v380 = vld [vmem:[%s9] sm:$0x1]
    %v382 = vlaneseq
    %v383 = vshrl.u32 %v382, 7
    %v384 = vsub.s32 0, %v383
    %v385 = vrot.slane %v380, %v384
    %v387 = vadd.f32 %v377, %v385
    %v388 = vmax.f32 %v387, 0.0
    %v389 = vld [vmem:[%s10] sm:$0xff]
    %v390 = vld [vmem:[%s10 + $0x8] sm:$0xff]
    %v391 = vld [vmem:[%s10 + $0x10] sm:$0xff]
    %v392 = vld [vmem:[%s10 + $0x18] sm:$0xff]
    %v393 = vld [vmem:[%s11] sm:$0x1]
    %v395 = vlaneseq
    %v396 = vshrl.u32 %v395, 7
    %v397 = vsub.s32 0, %v396
    %v398 = vrot.slane %v393, %v397
    %v401 = vsel %vm155, %v388, 0
    %403 = vmatprep.subr.mxu0 0.0
    %404 = vmatpush1.msra.mxu0 0.0
    %405 = vmatprep.subr.mxu0 0.0
    %406 = vmatpush1.msra.mxu0 0.0
    %407 = vmatprep.subr.mxu0 0.0
    %408 = vmatpush1.msra.mxu0 0.0
    %409 = vmatprep.subr.mxu0 0.0
    %410 = vmatpush1.msra.mxu0 0.0
    %411 = vmatprep.subr.mxu0 0.0
    %412 = vmatpush1.msra.mxu0 0.0
    %413 = vmatprep.subr.mxu0 0.0
    %414 = vmatpush1.msra.mxu0 0.0
    %415 = vmatprep.subr.mxu0 0.0
    %416 = vmatpush1.msra.mxu0 0.0
    %417 = vmatprep.subr.mxu0 0.0
    %418 = vmatpush1.msra.mxu0 0.0
    %419 = vmatprep.subr.mxu0 0.0
    %420 = vmatpush1.msra.mxu0 0.0
    %421 = vmatprep.subr.mxu0 0.0
    %422 = vmatpush1.msra.mxu0 0.0
    %423 = vmatprep.subr.mxu0 0.0
    %424 = vmatpush1.msra.mxu0 0.0
    %425 = vmatprep.subr.mxu0 0.0
    %426 = vmatpush1.msra.mxu0 0.0
    %427 = vmatprep.subr.mxu0 0.0
    %428 = vmatpush1.msra.mxu0 %v392
    %429 = vmatprep.subr.mxu0 0.0
    %430 = vmatpush1.msra.mxu0 %v391
    %431 = vmatprep.subr.mxu0 0.0
    %432 = vmatpush1.msra.mxu0 %v390
    %433 = vmatprep.subr.mxu0 0.0
    %434 = vmatpush1.msra.mxu0 %v389
    %435 = vmatprep.subr.mxu0 0.0
    %436 = vmatpush2.msra.mxu0 0.0
    %437 = vmatprep.subr.mxu0 0.0
    %438 = vmatpush2.msra.mxu0 0.0
    %439 = vmatprep.subr.mxu0 0.0
    %440 = vmatpush2.msra.mxu0 0.0
    %441 = vmatprep.subr.mxu0 0.0
    %442 = vmatpush2.msra.mxu0 0.0
    %443 = vmatprep.subr.mxu0 0.0
    %444 = vmatpush2.msra.mxu0 0.0
    %445 = vmatprep.subr.mxu0 0.0
    %446 = vmatpush2.msra.mxu0 0.0
    %447 = vmatprep.subr.mxu0 0.0
    %448 = vmatpush2.msra.mxu0 0.0
    %449 = vmatprep.subr.mxu0 0.0
    %450 = vmatpush2.msra.mxu0 0.0
    %451 = vmatprep.subr.mxu0 0.0
    %452 = vmatpush2.msra.mxu0 0.0
    %453 = vmatprep.subr.mxu0 0.0
    %454 = vmatpush2.msra.mxu0 0.0
    %455 = vmatprep.subr.mxu0 0.0
    %456 = vmatpush2.msra.mxu0 0.0
    %457 = vmatprep.subr.mxu0 0.0
    %458 = vmatpush2.msra.mxu0 0.0
    %459 = vmatprep.subr.mxu0 0.0
    %460 = vmatpush2.msra.mxu0 0.0
    %461 = vmatprep.subr.mxu0 0.0
    %462 = vmatpush2.msra.mxu0 0.0
    %463 = vmatprep.subr.mxu0 0.0
    %464 = vmatpush2.msra.mxu0 0.0
    %465 = vmatprep.subr.mxu0 0.0
    %466 = vmatpush2.msra.mxu0 0.0
    %467 = vmatprep.mubr.f32.mxu0 0.0
    %468 = vmatmul.mubr.f32.gmra.mxu0 %v401
    %v469 = vpop.f32.mrf.mxu0
    %v470 = vadd.f32 %v398, %v469
    %v471 = vpop.f32.mrf.mxu0
    %472 = vdwg.mxu0
    %v473 = vmul.f32 %v470, 1.442695
    %v474 = vpow.pop %v473
    %476 = vrot.lane.b32.xlu0 %v59, 8
    %v477 = vpop.permute.xlu0 %476
    %v479 = vmul.f32 %v474, %v477
    %481 = vrot.lane.b32.xlu0 %v479, 120
    %v482 = vpop.permute.xlu0 %481
    %v484 = vadd.f32 %v470, %v482
    %v485 = vld [vmem:[%s12] sm:$0xff]
    %v486 = vld [vmem:[%s13] sm:$0xff]
    %487 = vmatprep.subr.mxu0 0.0
    %488 = vmatpush1.msra.mxu0 0.0
    %489 = vmatprep.subr.mxu0 0.0
    %490 = vmatpush1.msra.mxu0 0.0
    %491 = vmatprep.subr.mxu0 0.0
    %492 = vmatpush1.msra.mxu0 0.0
    %493 = vmatprep.subr.mxu0 0.0
    %494 = vmatpush1.msra.mxu0 0.0
    %495 = vmatprep.subr.mxu0 0.0
    %496 = vmatpush1.msra.mxu0 0.0
    %497 = vmatprep.subr.mxu0 0.0
    %498 = vmatpush1.msra.mxu0 0.0
    %499 = vmatprep.subr.mxu0 0.0
    %500 = vmatpush1.msra.mxu0 0.0
    %501 = vmatprep.subr.mxu0 0.0
    %502 = vmatpush1.msra.mxu0 0.0
    %503 = vmatprep.subr.mxu0 0.0
    %504 = vmatpush1.msra.mxu0 0.0
    %505 = vmatprep.subr.mxu0 0.0
    %506 = vmatpush1.msra.mxu0 0.0
    %507 = vmatprep.subr.mxu0 0.0
    %508 = vmatpush1.msra.mxu0 0.0
    %509 = vmatprep.subr.mxu0 0.0
    %510 = vmatpush1.msra.mxu0 0.0
    %511 = vmatprep.subr.mxu0 0.0
    %512 = vmatpush1.msra.mxu0 0.0
    %513 = vmatprep.subr.mxu0 0.0
    %514 = vmatpush1.msra.mxu0 0.0
    %515 = vmatprep.subr.mxu0 0.0
    %516 = vmatpush1.msra.mxu0 0.0
    %517 = vmatprep.subr.mxu0 0.0
    %518 = vmatpush1.msra.mxu0 %v486
    %519 = vmatprep.subr.mxu0 0.0
    %520 = vmatpush2.msra.mxu0 0.0
    %521 = vmatprep.subr.mxu0 0.0
    %522 = vmatpush2.msra.mxu0 0.0
    %523 = vmatprep.subr.mxu0 0.0
    %524 = vmatpush2.msra.mxu0 0.0
    %525 = vmatprep.subr.mxu0 0.0
    %526 = vmatpush2.msra.mxu0 0.0
    %527 = vmatprep.subr.mxu0 0.0
    %528 = vmatpush2.msra.mxu0 0.0
    %529 = vmatprep.subr.mxu0 0.0
    %530 = vmatpush2.msra.mxu0 0.0
    %531 = vmatprep.subr.mxu0 0.0
    %532 = vmatpush2.msra.mxu0 0.0
    %533 = vmatprep.subr.mxu0 0.0
    %534 = vmatpush2.msra.mxu0 0.0
    %535 = vmatprep.subr.mxu0 0.0
    %536 = vmatpush2.msra.mxu0 0.0
    %537 = vmatprep.subr.mxu0 0.0
    %538 = vmatpush2.msra.mxu0 0.0
    %539 = vmatprep.subr.mxu0 0.0
    %540 = vmatpush2.msra.mxu0 0.0
    %541 = vmatprep.subr.mxu0 0.0
    %542 = vmatpush2.msra.mxu0 0.0
    %543 = vmatprep.subr.mxu0 0.0
    %544 = vmatpush2.msra.mxu0 0.0
    %545 = vmatprep.subr.mxu0 0.0
    %546 = vmatpush2.msra.mxu0 0.0
    %547 = vmatprep.subr.mxu0 0.0
    %548 = vmatpush2.msra.mxu0 0.0
    %549 = vmatprep.subr.mxu0 0.0
    %550 = vmatpush2.msra.mxu0 0.0
    %551 = vmatprep.mubr.f32.mxu0 0.0
    %552 = vmatmul.mubr.f32.gmra.mxu0 %v235
    %v553 = vpop.f32.mrf.mxu0
    %v554 = vadd.f32 0.0, %v553
    %v555 = vpop.f32.mrf.mxu0
    %556 = vdwg.mxu0
    %v558 = vsel %vm233, %v484, 0
    %560 = vmatprep.subr.mxu0 0.0
    %561 = vmatpush1.msra.mxu0 0.0
    %562 = vmatprep.subr.mxu0 0.0
    %563 = vmatpush1.msra.mxu0 0.0
    %564 = vmatprep.subr.mxu0 0.0
    %565 = vmatpush1.msra.mxu0 0.0
    %566 = vmatprep.subr.mxu0 0.0
    %567 = vmatpush1.msra.mxu0 0.0
    %568 = vmatprep.subr.mxu0 0.0
    %569 = vmatpush1.msra.mxu0 0.0
    %570 = vmatprep.subr.mxu0 0.0
    %571 = vmatpush1.msra.mxu0 0.0
    %572 = vmatprep.subr.mxu0 0.0
    %573 = vmatpush1.msra.mxu0 0.0
    %574 = vmatprep.subr.mxu0 0.0
    %575 = vmatpush1.msra.mxu0 0.0
    %576 = vmatprep.subr.mxu0 0.0
    %577 = vmatpush1.msra.mxu0 0.0
    %578 = vmatprep.subr.mxu0 0.0
    %579 = vmatpush1.msra.mxu0 0.0
    %580 = vmatprep.subr.mxu0 0.0
    %581 = vmatpush1.msra.mxu0 0.0
    %582 = vmatprep.subr.mxu0 0.0
    %583 = vmatpush1.msra.mxu0 0.0
    %584 = vmatprep.subr.mxu0 0.0
    %585 = vmatpush1.msra.mxu0 0.0
    %586 = vmatprep.subr.mxu0 0.0
    %587 = vmatpush1.msra.mxu0 0.0
    %588 = vmatprep.subr.mxu0 0.0
    %589 = vmatpush1.msra.mxu0 0.0
    %590 = vmatprep.subr.mxu0 0.0
    %591 = vmatpush1.msra.mxu0 %v485
    %592 = vmatprep.subr.mxu0 0.0
    %593 = vmatpush2.msra.mxu0 0.0
    %594 = vmatprep.subr.mxu0 0.0
    %595 = vmatpush2.msra.mxu0 0.0
    %596 = vmatprep.subr.mxu0 0.0
    %597 = vmatpush2.msra.mxu0 0.0
    %598 = vmatprep.subr.mxu0 0.0
    %599 = vmatpush2.msra.mxu0 0.0
    %600 = vmatprep.subr.mxu0 0.0
    %601 = vmatpush2.msra.mxu0 0.0
    %602 = vmatprep.subr.mxu0 0.0
    %603 = vmatpush2.msra.mxu0 0.0
    %604 = vmatprep.subr.mxu0 0.0
    %605 = vmatpush2.msra.mxu0 0.0
    %606 = vmatprep.subr.mxu0 0.0
    %607 = vmatpush2.msra.mxu0 0.0
    %608 = vmatprep.subr.mxu0 0.0
    %609 = vmatpush2.msra.mxu0 0.0
    %610 = vmatprep.subr.mxu0 0.0
    %611 = vmatpush2.msra.mxu0 0.0
    %612 = vmatprep.subr.mxu0 0.0
    %613 = vmatpush2.msra.mxu0 0.0
    %614 = vmatprep.subr.mxu0 0.0
    %615 = vmatpush2.msra.mxu0 0.0
    %616 = vmatprep.subr.mxu0 0.0
    %617 = vmatpush2.msra.mxu0 0.0
    %618 = vmatprep.subr.mxu0 0.0
    %619 = vmatpush2.msra.mxu0 0.0
    %620 = vmatprep.subr.mxu0 0.0
    %621 = vmatpush2.msra.mxu0 0.0
    %622 = vmatprep.subr.mxu0 0.0
    %623 = vmatpush2.msra.mxu0 0.0
    %624 = vmatprep.mubr.f32.mxu0 0.0
    %625 = vmatmul.mubr.f32.gmra.mxu0 %v558
    %v626 = vpop.f32.mrf.mxu0
    %v627 = vadd.f32 %v554, %v626
    %v628 = vpop.f32.mrf.mxu0
    %629 = vdwg.mxu0
    %v630 = vld [vmem:[%s14] sm:$0x1]
    %v632 = vlaneseq
    %v633 = vshrl.u32 %v632, 7
    %v634 = vsub.s32 0, %v633
    %v635 = vrot.slane %v630, %v634
    %v637 = vadd.f32 %v627, %v635
    %v638 = vmax.f32 %v637, 0.0
    %v639 = vld [vmem:[%s15] sm:$0xff]
    %v640 = vld [vmem:[%s15 + $0x8] sm:$0xff]
    %v641 = vld [vmem:[%s15 + $0x10] sm:$0xff]
    %v642 = vld [vmem:[%s15 + $0x18] sm:$0xff]
    %v643 = vld [vmem:[%s16] sm:$0x1]
    %v645 = vlaneseq
    %v646 = vshrl.u32 %v645, 7
    %v647 = vsub.s32 0, %v646
    %v648 = vrot.slane %v643, %v647
    %v651 = vsel %vm155, %v638, 0
    %653 = vmatprep.subr.mxu0 0.0
    %654 = vmatpush1.msra.mxu0 0.0
    %655 = vmatprep.subr.mxu0 0.0
    %656 = vmatpush1.msra.mxu0 0.0
    %657 = vmatprep.subr.mxu0 0.0
    %658 = vmatpush1.msra.mxu0 0.0
    %659 = vmatprep.subr.mxu0 0.0
    %660 = vmatpush1.msra.mxu0 0.0
    %661 = vmatprep.subr.mxu0 0.0
    %662 = vmatpush1.msra.mxu0 0.0
    %663 = vmatprep.subr.mxu0 0.0
    %664 = vmatpush1.msra.mxu0 0.0
    %665 = vmatprep.subr.mxu0 0.0
    %666 = vmatpush1.msra.mxu0 0.0
    %667 = vmatprep.subr.mxu0 0.0
    %668 = vmatpush1.msra.mxu0 0.0
    %669 = vmatprep.subr.mxu0 0.0
    %670 = vmatpush1.msra.mxu0 0.0
    %671 = vmatprep.subr.mxu0 0.0
    %672 = vmatpush1.msra.mxu0 0.0
    %673 = vmatprep.subr.mxu0 0.0
    %674 = vmatpush1.msra.mxu0 0.0
    %675 = vmatprep.subr.mxu0 0.0
    %676 = vmatpush1.msra.mxu0 0.0
    %677 = vmatprep.subr.mxu0 0.0
    %678 = vmatpush1.msra.mxu0 %v642
    %679 = vmatprep.subr.mxu0 0.0
    %680 = vmatpush1.msra.mxu0 %v641
    %681 = vmatprep.subr.mxu0 0.0
    %682 = vmatpush1.msra.mxu0 %v640
    %683 = vmatprep.subr.mxu0 0.0
    %684 = vmatpush1.msra.mxu0 %v639
    %685 = vmatprep.subr.mxu0 0.0
    %686 = vmatpush2.msra.mxu0 0.0
    %687 = vmatprep.subr.mxu0 0.0
    %688 = vmatpush2.msra.mxu0 0.0
    %689 = vmatprep.subr.mxu0 0.0
    %690 = vmatpush2.msra.mxu0 0.0
    %691 = vmatprep.subr.mxu0 0.0
    %692 = vmatpush2.msra.mxu0 0.0
    %693 = vmatprep.subr.mxu0 0.0
    %694 = vmatpush2.msra.mxu0 0.0
    %695 = vmatprep.subr.mxu0 0.0
    %696 = vmatpush2.msra.mxu0 0.0
    %697 = vmatprep.subr.mxu0 0.0
    %698 = vmatpush2.msra.mxu0 0.0
    %699 = vmatprep.subr.mxu0 0.0
    %700 = vmatpush2.msra.mxu0 0.0
    %701 = vmatprep.subr.mxu0 0.0
    %702 = vmatpush2.msra.mxu0 0.0
    %703 = vmatprep.subr.mxu0 0.0
    %704 = vmatpush2.msra.mxu0 0.0
    %705 = vmatprep.subr.mxu0 0.0
    %706 = vmatpush2.msra.mxu0 0.0
    %707 = vmatprep.subr.mxu0 0.0
    %708 = vmatpush2.msra.mxu0 0.0
    %709 = vmatprep.subr.mxu0 0.0
    %710 = vmatpush2.msra.mxu0 0.0
    %711 = vmatprep.subr.mxu0 0.0
    %712 = vmatpush2.msra.mxu0 0.0
    %713 = vmatprep.subr.mxu0 0.0
    %714 = vmatpush2.msra.mxu0 0.0
    %715 = vmatprep.subr.mxu0 0.0
    %716 = vmatpush2.msra.mxu0 0.0
    %717 = vmatprep.mubr.f32.mxu0 0.0
    %718 = vmatmul.mubr.f32.gmra.mxu0 %v651
    %v719 = vpop.f32.mrf.mxu0
    %v720 = vadd.f32 %v648, %v719
    %v721 = vpop.f32.mrf.mxu0
    %722 = vdwg.mxu0
    %724 = vrot.lane.b32.xlu0 %v470, 16
    %v725 = vpop.permute.xlu0 %724
    %728 = vrot.lane.b32.xlu0 %v474, 16
    %v729 = vpop.permute.xlu0 %728
    %v731 = vsel %vm69, %v720, %v725
    %vm732 = vcmask 195584
    %v733 = vsel %vm732, %v731, %v729
    %734 = vst.msk [vmem:[#allocation2] sm:$0xff] %vm155, %v733
    // Predicated region
    $region70: #{tpu_custom_call.1} parent=1 // pred_check
      _
    $region71: #{tpu_custom_call.1} parent=1 // pred_check_branch
      %736 = sbr.rel (0) target = $region73
    $region72: #{tpu_custom_call.1} parent=1 // pred_region
      %s738 = ssub.s32 128, 128
      %739 = vsyncadd [#allocation3], %s738
      %s741 = sshll.u32 [#allocation2], 4
      %s742 = int_to_ptr.vmem [resolvable:$true] %s741
      %744 = dma.vmem_to_hbm [thread:$0]  %s742, 128, %s17, [#allocation3]
    $region73: #{tpu_custom_call.1} parent=1 // pred_fallthru
      _
    // Predicated region
    $region74: #{tpu_custom_call.1} parent=1 // pred_check
      _
    $region75: #{tpu_custom_call.1} parent=1 // pred_check_branch
      %746 = sbr.rel (0) target = $region77
    $region76: #{tpu_custom_call.1} parent=1 // pred_region
      %747 = dma.done [#allocation3], 128
    $region77: #{tpu_custom_call.1} parent=1 // pred_fallthru
      _
    %748 = vsyncpa [#allocation3], 1

</llo_original>
